<compile_context>
chip_gen: v6e
topology: v6e:2x2x1
jax: 0.10.0
libtpu: 0.0.40
codegen_flags: <defaults>
</compile_context>

<pallas_src>
import functools

import jax
import jax.numpy as jnp
from jax import lax
from jax.experimental import pallas as pl
from jax.experimental.pallas import tpu as pltpu


_LANE = 128
_SUBLANE = 8
_MAX_TK = 65536          # absolute lane cap; the real cap is the VMEM budget / K itself
_ROW_BLOCK = 256         # >=256 keeps the 2x256x256 MXU (v6e/v7x) full; 128-aligned for v5e
_ROW_TILED_MIN_N = 512   # below this the full Gram comfortably fits VMEM on every gen


def _cdiv(a, b):
    return -(-a // b)


def _itemsize(dtype):
    return 2 if dtype == jnp.bfloat16 else 4


@functools.lru_cache(maxsize=1)
def _vmem_limits():
    """(vmem_limit_bytes, planning_budget_bytes), generation-aware."""
    cap = None
    try:
        cap = getattr(pltpu.get_tpu_info(), "vmem_capacity_bytes", None)
    except Exception:
        cap = None
    if not cap:
        cap = 64 * 1024 * 1024                 # conservative fallback (v7x per-core VMEM)
    limit = min(int(cap) * 3 // 4, 128 * 1024 * 1024)
    budget = int(limit * 0.85)                 # headroom for Mosaic-internal scratch
    return limit, budget


def _pick_tk(k, bytes_per_col, budget_left):
    """Largest lane-aligned K tile whose streamed buffers fit the remaining budget."""
    tk = max(budget_left, 0) // max(bytes_per_col, 1)
    tk = (tk // _LANE) * _LANE
    tk = max(tk, _LANE)
    tk = min(tk, _MAX_TK)
    if tk >= k:
        return int(k)                          # single full-K tile: no tail mask needed
    return int(tk)


def _flatten(x, dtype):
    """(b, c, h, w) -> (b*c, h*w); layout-preserving reshape, cast only if needed."""
    b, c, h, w = x.shape
    return x.reshape(b * c, h * w).astype(dtype)


def _mask_k_tail(x, kk, tk, k_total):
    """Zero out-of-bounds tail columns of the last K tile (only compiled when K % tk)."""
    col = kk * tk + lax.broadcasted_iota(jnp.int32, (1, x.shape[-1]), 1)
    return jnp.where(col < k_total, x, jnp.zeros_like(x))


# ---------------------------------------------------------------------------
# Raw (unscaled) Gram matrix X @ X.T, row-block tiled, accumulated over K tiles.
# Used once at __init__ to precompute the target Gram.
# ---------------------------------------------------------------------------
def _gram_kernel(xr_ref, xa_ref, o_ref, acc_ref, *, k_total, tk):
    kk = pl.program_id(1)

    @pl.when(kk == 0)
    def _init():
        acc_ref[...] = jnp.zeros_like(acc_ref)

    xr = xr_ref[...]                              # (tr, tk)  rows of this block
    xa = xa_ref[...]                              # (N,  tk)  all rows
    if k_total % tk:                              # static: mask garbage tail columns
        xr = _mask_k_tail(xr, kk, tk, k_total)
        xa = _mask_k_tail(xa, kk, tk, k_total)
    # Contract dim 1 of both operands: rows @ all.T without materializing a transpose.
    # TODO(synk): confirm via pl.lower_as_mlir that this contraction emits no per-tile
    # vxpose (it would share the vector-extended issue slots with vmatmul).
    acc_ref[...] += lax.dot_general(
        xr, xa, (((1,), (1,)), ((), ())), preferred_element_type=jnp.float32)

    @pl.when(kk == pl.num_programs(1) - 1)
    def _finalize():
        o_ref[...] = acc_ref[...]


def gram_raw_pallas(xf):
    """xf: (N, K). Returns the unscaled Gram X @ X.T as f32 (N, N)."""
    n, k = xf.shape
    itemsize = _itemsize(xf.dtype)
    limit, budget = _vmem_limits()
    tr = min(_ROW_BLOCK, n)
    fixed = 3 * tr * n * 4                       # f32 accumulator + 2 output buffers
    tk = _pick_tk(k, 2 * (n + tr) * itemsize, budget - fixed)
    return pl.pallas_call(
        functools.partial(_gram_kernel, k_total=k, tk=tk),
        out_shape=jax.ShapeDtypeStruct((n, n), jnp.float32),
        grid_spec=pltpu.PrefetchScalarGridSpec(
            num_scalar_prefetch=0,
            grid=(_cdiv(n, tr), _cdiv(k, tk)),
            in_specs=[
                pl.BlockSpec((tr, tk), lambda i, kk: (i, kk)),   # rows of block i
                pl.BlockSpec((n, tk), lambda i, kk: (0, kk)),    # all rows
            ],
            out_specs=pl.BlockSpec((tr, n), lambda i, kk: (i, 0)),
            scratch_shapes=[pltpu.VMEM((tr, n), jnp.float32)],
        ),
        compiler_params=pltpu.CompilerParams(
            dimension_semantics=("parallel", "arbitrary"),
            vmem_limit_bytes=limit),
    )(xf, xf)


# ---------------------------------------------------------------------------
# Style loss, small-N path: Gram(x) accumulated over K with the whole (N, N)
# target Gram resident in VMEM; MSE in the finalize step, scaling folded into
# one scalar constant.
# ---------------------------------------------------------------------------
def _style_loss_small_kernel(x_ref, gt_ref, out_ref, acc_ref, *, scale, k_total, tk):
    kk = pl.program_id(0)

    @pl.when(kk == 0)
    def _init():
        acc_ref[...] = jnp.zeros_like(acc_ref)

    xk = x_ref[...]                               # (N, tk)
    if k_total % tk:                              # static: mask garbage tail columns
        xk = _mask_k_tail(xk, kk, tk, k_total)
    acc_ref[...] += lax.dot_general(
        xk, xk, (((1,), (1,)), ((), ())), preferred_element_type=jnp.float32)

    @pl.when(kk == pl.num_programs(0) - 1)
    def _finalize():
        d = acc_ref[...] - gt_ref[...]            # both Grams unscaled
        out_ref[0, 0] = jnp.sum(d * d) * scale


# ---------------------------------------------------------------------------
# Style loss, row-tiled path (large N): grid (row_blocks, K tiles), "parallel"
# over row blocks (both v7x TensorCores), (tr, N) accumulator, per-row-block
# partial squared-diff sums written to SMEM and summed outside.
# ---------------------------------------------------------------------------
def _style_loss_rowtiled_kernel(xr_ref, xa_ref, gt_ref, out_ref, acc_ref,
                                *, scale, n_rows, tr, k_total, tk):
    i = pl.program_id(0)
    kk = pl.program_id(1)

    @pl.when(kk == 0)
    def _init():
        acc_ref[...] = jnp.zeros_like(acc_ref)

    xr = xr_ref[...]                              # (tr, tk)
    xa = xa_ref[...]                              # (N,  tk)
    if k_total % tk:                              # static: mask garbage tail columns
        xr = _mask_k_tail(xr, kk, tk, k_total)
        xa = _mask_k_tail(xa, kk, tk, k_total)
    acc_ref[...] += lax.dot_general(
        xr, xa, (((1,), (1,)), ((), ())), preferred_element_type=jnp.float32)

    @pl.when(kk == pl.num_programs(1) - 1)
    def _finalize():
        d = acc_ref[...] - gt_ref[...]            # (tr, N)
        if n_rows % tr:                           # static: mask garbage tail rows
            row = i * tr + lax.broadcasted_iota(jnp.int32, (tr, 1), 0)
            d = jnp.where(row < n_rows, d, jnp.zeros_like(d))
        out_ref[0, 0] = jnp.sum(d * d) * scale    # partial loss for this row block


class StyleLossPallas:
    """Pallas equivalent of StyleLoss(target): precomputes Gram(target) once."""

    def __init__(self, target, *, cast_to_bf16=False):
        b, c, h, w = target.shape
        self._shape = target.shape
        self._n = b * c
        self._k = h * w
        # bf16 feature maps are fed to the MXU as bf16 (f32 accumulation); f32 stays
        # f32 unless the caller opts into the bf16 cast (bandwidth win on v5e).
        # Any x passed to __call__ is cast to this dtype, so tile/itemsize planning
        # is always consistent with what the kernel actually streams.
        if target.dtype == jnp.bfloat16 or cast_to_bf16:
            self._dtype = jnp.bfloat16
        else:
            self._dtype = jnp.float32

        tflat = _flatten(target, self._dtype)
        self._gt_raw = jax.block_until_ready(gram_raw_pallas(tflat))

        inv_hw = 1.0 / float(h * w)               # GramMatrix scaling (applied to both Grams)
        inv_n2 = 1.0 / float(self._n * self._n)   # MSELoss mean over (b*c)^2 elements
        inv_c2 = 1.0 / float(c * c)               # 1 / channel**2
        self._scale = inv_hw * inv_hw * inv_n2 * inv_c2

        # Large N never keeps an (N, N) accumulator resident: it is row-tiled instead
        # (correctness/robustness guard for VMEM, plus 2-TensorCore parallelism on v7x).
        self._row_tiled = self._n >= _ROW_TILED_MIN_N
        self._buffered_ok = None                  # probed lazily (pl.Buffered support)
        self._plan()

    def _plan(self):
        n, k = self._n, self._k
        itemsize = _itemsize(self._dtype)
        self._vmem_limit, budget = _vmem_limits()
        if self._row_tiled:
            tr = min(_ROW_BLOCK, n)
            # Shrink the row block until acc + gt row block + minimal x tiles fit.
            while tr > _SUBLANE and (3 * tr * n * 4
                                     + 2 * (n + tr) * itemsize * _LANE) > budget:
                tr //= 2
            tr = max(tr, _SUBLANE)
            fixed = 3 * tr * n * 4                # acc + double-buffered gt row block
            tk = _pick_tk(k, 2 * (n + tr) * itemsize, budget - fixed)
        else:
            tr = n
            # acc + single-buffered resident target Gram + triple-buffered x stream.
            fixed = 2 * n * n * 4
            tk = _pick_tk(k, 3 * n * itemsize, budget - fixed)
        self._tr, self._tk = tr, tk

    def _small_call(self, use_buffered):
        n, k, tk = self._n, self._k, self._tk
        nk = _cdiv(k, tk)
        if use_buffered:
            # Constant index_map -> the target Gram never changes: single-buffer it.
            gt_spec = pl.BlockSpec((n, n), lambda kk: (0, 0),
                                   pipeline_mode=pl.Buffered(1))
            if nk >= 3:
                # Small per-step DMAs: deepen the streamed-x pipeline.
                x_spec = pl.BlockSpec((n, tk), lambda kk: (0, kk),
                                      pipeline_mode=pl.Buffered(3))
            else:
                x_spec = pl.BlockSpec((n, tk), lambda kk: (0, kk))
        else:
            gt_spec = pl.BlockSpec((n, n), lambda kk: (0, 0))
            x_spec = pl.BlockSpec((n, tk), lambda kk: (0, kk))
        return pl.pallas_call(
            functools.partial(_style_loss_small_kernel,
                              scale=self._scale, k_total=k, tk=tk),
            out_shape=jax.ShapeDtypeStruct((1, 1), jnp.float32),
            grid_spec=pltpu.PrefetchScalarGridSpec(
                num_scalar_prefetch=0,
                grid=(nk,),
                in_specs=[x_spec, gt_spec],
                out_specs=pl.BlockSpec((1, 1), lambda kk: (0, 0),
                                       memory_space=pltpu.SMEM),
                scratch_shapes=[pltpu.VMEM((n, n), jnp.float32)],
            ),
            compiler_params=pltpu.CompilerParams(
                dimension_semantics=("arbitrary",),
                vmem_limit_bytes=self._vmem_limit),
        )

    def _rowtiled_call(self):
        n, k, tr, tk = self._n, self._k, self._tr, self._tk
        n_row_blocks = _cdiv(n, tr)
        return pl.pallas_call(
            functools.partial(_style_loss_rowtiled_kernel, scale=self._scale,
                              n_rows=n, tr=tr, k_total=k, tk=tk),
            out_shape=jax.ShapeDtypeStruct((n_row_blocks, 1), jnp.float32),
            grid_spec=pltpu.PrefetchScalarGridSpec(
                num_scalar_prefetch=0,
                grid=(n_row_blocks, _cdiv(k, tk)),
                in_specs=[
                    pl.BlockSpec((tr, tk), lambda i, kk: (i, kk)),   # rows of block i
                    pl.BlockSpec((n, tk), lambda i, kk: (0, kk)),    # all rows
                    pl.BlockSpec((tr, n), lambda i, kk: (i, 0)),     # target Gram rows
                ],
                out_specs=pl.BlockSpec((1, 1), lambda i, kk: (i, 0),
                                       memory_space=pltpu.SMEM),
                scratch_shapes=[pltpu.VMEM((tr, n), jnp.float32)],
            ),
            compiler_params=pltpu.CompilerParams(
                dimension_semantics=("parallel", "arbitrary"),
                vmem_limit_bytes=self._vmem_limit),
        )

    def __call__(self, x):
        assert x.shape == self._shape, (x.shape, self._shape)
        xf = _flatten(x, self._dtype)             # no padding: view-like reshape only

        if self._row_tiled:
            partial = self._rowtiled_call()(xf, xf, self._gt_raw)
            return jnp.sum(partial)

        if self._buffered_ok is None:
            # Probe pl.Buffered(1)/(3) once; fall back to default double-buffering on
            # JAX/Mosaic versions that reject pipeline_mode (correctness > micro-opt).
            try:
                out = jax.block_until_ready(self._small_call(True)(xf, self._gt_raw))
                self._buffered_ok = True
                return out[0, 0]
            except Exception:
                self._buffered_ok = False
        out = self._small_call(self._buffered_ok)(xf, self._gt_raw)
        return out[0, 0]


def style_loss_reference(x, target):
    b, c, h, w = x.shape
    xf = x.reshape(b * c, h * w).astype(jnp.float32)
    tf = target.reshape(b * c, h * w).astype(jnp.float32)
    gx = (xf @ xf.T) / (h * w)
    gt = (tf @ tf.T) / (h * w)
    return jnp.mean((gx - gt) ** 2) / (c * c)


if __name__ == "__main__":
    key = jax.random.PRNGKey(0)
    kx, kt, kx2, kt2 = jax.random.split(key, 4)

    # Small-N path (resident target Gram, single "arbitrary" K grid).
    b, c, h, w = 2, 4, 16, 16
    x = jax.random.normal(kx, (b, c, h, w), dtype=jnp.float32)
    target = jax.random.normal(kt, (b, c, h, w), dtype=jnp.float32)   # fixed at __init__
    style_loss = StyleLossPallas(target)
    loss = jax.block_until_ready(style_loss(x))
    ref = style_loss_reference(x, target)
    assert jnp.allclose(loss, ref, rtol=1e-5, atol=1e-6), (loss, ref)

    # Row-tiled path ("parallel" row blocks), exercised at a larger channel count.
    b2, c2, h2, w2 = 2, 256, 16, 16            # N = b*c = 512 -> two 256-row blocks
    x2 = jax.random.normal(kx2, (b2, c2, h2, w2), dtype=jnp.float32)
    t2 = jax.random.normal(kt2, (b2, c2, h2, w2), dtype=jnp.float32)
    style_loss2 = StyleLossPallas(t2)
    loss2 = jax.block_until_ready(style_loss2(x2))
    ref2 = style_loss_reference(x2, t2)
    assert jnp.allclose(loss2, ref2, rtol=1e-3, atol=1e-10), (loss2, ref2)

    print("KERNEL_OK")
</pallas_src>

<mosaic_0001>
module attributes {stable_mosaic.version = 11 : i64} {
  func.func @_gram_kernel(%arg0: i32, %arg1: i32, %arg2: memref<8x256xf32, #tpu.memory_space<vmem>>, %arg3: memref<8x256xf32, #tpu.memory_space<vmem>>, %arg4: memref<8x8xf32, #tpu.memory_space<vmem>>, %arg5: memref<8x8xf32, #tpu.memory_space<vmem>>) attributes {dimension_semantics = [#tpu.dimension_semantics<parallel>, #tpu.dimension_semantics<arbitrary>], iteration_bounds = array<i64: 1, 1>, scalar_prefetch = 0 : i64, scratch_operands = 1 : i64, tpu.core_type = #tpu.core_type<tc>, window_params = [{transform_indices = @transform_0, window_bounds = array<i64: 8, 256>}, {transform_indices = @transform_1, window_bounds = array<i64: 8, 256>}, {transform_indices = @transform_2, window_bounds = array<i64: 8, 8>}]} {
    %c0_i32 = arith.constant 0 : i32
    %0 = arith.cmpi eq, %arg1, %c0_i32 : i32
    %1 = arith.extui %0 : i1 to i32
    %c0_i32_0 = arith.constant 0 : i32
    %2 = arith.cmpi ne, %1, %c0_i32_0 : i32
    scf.if %2 {
      %cst_10 = arith.constant 0.000000e+00 : f32
      %12 = vector.broadcast %cst_10 : f32 to vector<8x8xf32>
      %c0_11 = arith.constant 0 : index
      %c0_12 = arith.constant 0 : index
      %13 = vector.load %arg5[%c0_11, %c0_12] : memref<8x8xf32, #tpu.memory_space<vmem>>, vector<8x8xf32>
      tpu.vector_store %arg5[%c0_11, %c0_12], %12 {strides = array<i32>} : memref<8x8xf32, #tpu.memory_space<vmem>>, vector<8x8xf32>,
    } else {
    }
    %c0 = arith.constant 0 : index
    %c0_1 = arith.constant 0 : index
    %3 = vector.load %arg2[%c0, %c0_1] : memref<8x256xf32, #tpu.memory_space<vmem>>, vector<8x256xf32>
    %c0_2 = arith.constant 0 : index
    %c0_3 = arith.constant 0 : index
    %4 = vector.load %arg3[%c0_2, %c0_3] : memref<8x256xf32, #tpu.memory_space<vmem>>, vector<8x256xf32>
    %c0_4 = arith.constant 0 : index
    %c0_5 = arith.constant 0 : index
    %5 = vector.load %arg5[%c0_4, %c0_5] : memref<8x8xf32, #tpu.memory_space<vmem>>, vector<8x8xf32>
    %cst = arith.constant dense<0.000000e+00> : vector<8x8xf32>
    %6 = tpu.matmul %3, %4, %cst {dimension_numbers = #tpu.dot_dimension_numbers<[1], [1], [0], [0], [0, 0, 1, 0], [], []>} : vector<8x256xf32>, vector<8x256xf32>, vector<8x8xf32> -> vector<8x8xf32>
    %7 = arith.addf %5, %6 : vector<8x8xf32>
    %c0_6 = arith.constant 0 : index
    %c0_7 = arith.constant 0 : index
    %8 = vector.load %arg5[%c0_6, %c0_7] : memref<8x8xf32, #tpu.memory_space<vmem>>, vector<8x8xf32>
    tpu.vector_store %arg5[%c0_6, %c0_7], %7 {strides = array<i32>} : memref<8x8xf32, #tpu.memory_space<vmem>>, vector<8x8xf32>,
    %c0_i32_8 = arith.constant 0 : i32
    %9 = arith.cmpi eq, %arg1, %c0_i32_8 : i32
    %10 = arith.extui %9 : i1 to i32
    %c0_i32_9 = arith.constant 0 : i32
    %11 = arith.cmpi ne, %10, %c0_i32_9 : i32
    scf.if %11 {
      %c0_10 = arith.constant 0 : index
      %c0_11 = arith.constant 0 : index
      %12 = vector.load %arg5[%c0_10, %c0_11] : memref<8x8xf32, #tpu.memory_space<vmem>>, vector<8x8xf32>
      %c0_12 = arith.constant 0 : index
      %c0_13 = arith.constant 0 : index
      %13 = vector.load %arg4[%c0_12, %c0_13] : memref<8x8xf32, #tpu.memory_space<vmem>>, vector<8x8xf32>
      tpu.vector_store %arg4[%c0_12, %c0_13], %12 {strides = array<i32>} : memref<8x8xf32, #tpu.memory_space<vmem>>, vector<8x8xf32>,
    } else {
    }
    return
  }
  func.func @transform_0(%arg0: i32, %arg1: i32) -> (i32, i32) {
    %c0_i32 = arith.constant 0 : i32
    return %arg0, %arg1 : i32, i32
  }
  func.func @transform_1(%arg0: i32, %arg1: i32) -> (i32, i32) {
    %c0_i32 = arith.constant 0 : i32
    %c0_i32_0 = arith.constant 0 : i32
    return %c0_i32, %arg1 : i32, i32
  }
  func.func @transform_2(%arg0: i32, %arg1: i32) -> (i32, i32) {
    %c0_i32 = arith.constant 0 : i32
    %c0_i32_0 = arith.constant 0 : i32
    return %arg0, %c0_i32 : i32, i32
  }
}

</mosaic_0001>

<llo_original>
// kernel: tpu_custom_call.1
$region0: #{tpu_custom_call.1}
  #allocation0 [shape = 'u32[]', space=smem, size = 0x4, offset = 0x4, fixed_abs, tag = 'smem constant byte address 0x4 - core index']
  #allocation1 [shape = 'u32[144,128]{1,0:T(1,128)}', space=vmem, size = 0x12000, scoped, tag = 'internal scratch']
  #allocation2 [shape = 'f32[8,8]{1,0:T(8,128)}', space=vmem, size = 0x1000, scoped, tag = 'scratch operand']
  %s0 = inlined_call_operand.hbm [shape: f32[8,256], index: 0, kind: input, shape index: {}]
  %s1 = inlined_call_operand.hbm [shape: f32[8,256], index: 1, kind: input, shape index: {}]
  %s2 = inlined_call_operand.hbm [shape: f32[8,8], index: 2, kind: output, shape index: {}]
  %s3 = sld [smem:[#allocation0]]
  $region34: #{tpu_custom_call.1} parent=0
    _
  %s5 = ssub.s32 1, %s3
  %s6 = scalar_select 0, %s5, %s3
  $region1: #{tpu_custom_call.1} parent=0
    #allocation3 [shape = 'u8[8192]{0}', space=vmem, size = 0x2000, scoped, tag = 'input window, operand 0, single buffered']
    #allocation4 [shape = 's32[1]{0}', space=sflag, size = 0x4, scoped, tag = 'scoped memory for tpu_custom_call.1']
    #allocation5 [shape = 's32[1]{0}', space=sflag, size = 0x4, scoped, tag = 'scoped memory for tpu_custom_call.1']
    #allocation6 [shape = 'u8[8192]{0}', space=vmem, size = 0x2000, scoped, tag = 'input window, operand 1, single buffered']
    #allocation7 [shape = 's32[1]{0}', space=sflag, size = 0x4, scoped, tag = 'scoped memory for tpu_custom_call.1']
    #allocation8 [shape = 'u8[4096]{0}', space=vmem, size = 0x1000, scoped, tag = 'output window, operand 0, single buffered']
    %7 = vsyncpa [#allocation4], 0
    %8 = vsyncpa [#allocation7], 0
    %9 = vsyncpa [#allocation5], 0
    // Predicated region
    $region2: #{tpu_custom_call.1} parent=1 // pred_check
      _
    $region3: #{tpu_custom_call.1} parent=1 // pred_check_branch
      %11 = sbr.rel (0) target = $region5
    $region4: #{tpu_custom_call.1} parent=1 // pred_region
      %s13 = ssub.s32 256, 256
      %14 = vsyncadd [#allocation4], %s13
      %s16 = sshll.u32 [#allocation3], 4
      %s17 = int_to_ptr.vmem [resolvable:$true] %s16
      %19 = dma.hbm_to_vmem [thread:$0]  %s0, 256, %s17, [#allocation4]
    $region5: #{tpu_custom_call.1} parent=1 // pred_fallthru
      _
    // Predicated region
    $region6: #{tpu_custom_call.1} parent=1 // pred_check
      _
    $region7: #{tpu_custom_call.1} parent=1 // pred_check_branch
      %21 = sbr.rel (0) target = $region9
    $region8: #{tpu_custom_call.1} parent=1 // pred_region
      %s23 = ssub.s32 256, 256
      %24 = vsyncadd [#allocation7], %s23
      %s26 = sshll.u32 [#allocation6], 4
      %s27 = int_to_ptr.vmem [resolvable:$true] %s26
      %29 = dma.hbm_to_vmem [thread:$0]  %s1, 256, %s27, [#allocation7]
    $region9: #{tpu_custom_call.1} parent=1 // pred_fallthru
      _
    // Predicated region
    $region10: #{tpu_custom_call.1} parent=1 // pred_check
      _
    $region11: #{tpu_custom_call.1} parent=1 // pred_check_branch
      %31 = sbr.rel (0) target = $region13
    $region12: #{tpu_custom_call.1} parent=1 // pred_region
      %32 = dma.done [#allocation4], 256
    $region13: #{tpu_custom_call.1} parent=1 // pred_fallthru
      _
    // Predicated region
    $region14: #{tpu_custom_call.1} parent=1 // pred_check
      _
    $region15: #{tpu_custom_call.1} parent=1 // pred_check_branch
      %34 = sbr.rel (0) target = $region17
    $region16: #{tpu_custom_call.1} parent=1 // pred_region
      %35 = dma.done [#allocation7], 256
    $region17: #{tpu_custom_call.1} parent=1 // pred_fallthru
      _
    %p36 = scmp.eq.s32.totalorder 0, 0
    // Predicated region
    $region18: #{tpu_custom_call.1} parent=1 // pred_check
      %p37 = pneg %p36
    $region19: #{tpu_custom_call.1} parent=1 // pred_check_branch
      %39 = sbr.rel (%p37) target = $region21
    $region20: #{tpu_custom_call.1} parent=1 // pred_region
      %vm40 = vcmask 64512
      %41 = vst.msk [vmem:[#allocation2] sm:$0xff] %vm40, 0.0
    $region21: #{tpu_custom_call.1} parent=1 // pred_fallthru
      _
    %v42 = vld [vmem:[#allocation3] sm:$0xff]
    %v43 = vld [vmem:[#allocation3 + $0x8] sm:$0xff]
    %v44 = vld [vmem:[#allocation6] sm:$0xff]
    %v45 = vld [vmem:[#allocation6 + $0x8] sm:$0xff]
    %v46 = vld [vmem:[#allocation2] sm:$0xff]
    %47 = vmatprep.subr.mxu0 0.0
    %48 = vmatpush1.xpose.msra.mxu0 0.0
    %49 = vmatprep.subr.mxu0 0.0
    %50 = vmatpush1.xpose.msra.mxu0 0.0
    %51 = vmatprep.subr.mxu0 0.0
    %52 = vmatpush1.xpose.msra.mxu0 0.0
    %53 = vmatprep.subr.mxu0 0.0
    %54 = vmatpush1.xpose.msra.mxu0 0.0
    %55 = vmatprep.subr.mxu0 0.0
    %56 = vmatpush1.xpose.msra.mxu0 0.0
    %57 = vmatprep.subr.mxu0 0.0
    %58 = vmatpush1.xpose.msra.mxu0 0.0
    %59 = vmatprep.subr.mxu0 0.0
    %60 = vmatpush1.xpose.msra.mxu0 0.0
    %61 = vmatprep.subr.mxu0 0.0
    %62 = vmatpush1.xpose.msra.mxu0 0.0
    %63 = vmatprep.subr.mxu0 0.0
    %64 = vmatpush1.xpose.msra.mxu0 0.0
    %65 = vmatprep.subr.mxu0 0.0
    %66 = vmatpush1.xpose.msra.mxu0 0.0
    %67 = vmatprep.subr.mxu0 0.0
    %68 = vmatpush1.xpose.msra.mxu0 0.0
    %69 = vmatprep.subr.mxu0 0.0
    %70 = vmatpush1.xpose.msra.mxu0 0.0
    %71 = vmatprep.subr.mxu0 0.0
    %72 = vmatpush1.xpose.msra.mxu0 0.0
    %73 = vmatprep.subr.mxu0 0.0
    %74 = vmatpush1.xpose.msra.mxu0 0.0
    %75 = vmatprep.subr.mxu0 0.0
    %76 = vmatpush1.xpose.msra.mxu0 0.0
    %77 = vmatprep.subr.mxu0 %v45
    %78 = vmatpush1.xpose.msra.mxu0 %v44
    %79 = vmatprep.subr.mxu0 0.0
    %80 = vmatpush2.xpose.msra.mxu0 0.0
    %81 = vmatprep.subr.mxu0 0.0
    %82 = vmatpush2.xpose.msra.mxu0 0.0
    %83 = vmatprep.subr.mxu0 0.0
    %84 = vmatpush2.xpose.msra.mxu0 0.0
    %85 = vmatprep.subr.mxu0 0.0
    %86 = vmatpush2.xpose.msra.mxu0 0.0
    %87 = vmatprep.subr.mxu0 0.0
    %88 = vmatpush2.xpose.msra.mxu0 0.0
    %89 = vmatprep.subr.mxu0 0.0
    %90 = vmatpush2.xpose.msra.mxu0 0.0
    %91 = vmatprep.subr.mxu0 0.0
    %92 = vmatpush2.xpose.msra.mxu0 0.0
    %93 = vmatprep.subr.mxu0 0.0
    %94 = vmatpush2.xpose.msra.mxu0 0.0
    %95 = vmatprep.subr.mxu0 0.0
    %96 = vmatpush2.xpose.msra.mxu0 0.0
    %97 = vmatprep.subr.mxu0 0.0
    %98 = vmatpush2.xpose.msra.mxu0 0.0
    %99 = vmatprep.subr.mxu0 0.0
    %100 = vmatpush2.xpose.msra.mxu0 0.0
    %101 = vmatprep.subr.mxu0 0.0
    %102 = vmatpush2.xpose.msra.mxu0 0.0
    %103 = vmatprep.subr.mxu0 0.0
    %104 = vmatpush2.xpose.msra.mxu0 0.0
    %105 = vmatprep.subr.mxu0 0.0
    %106 = vmatpush2.xpose.msra.mxu0 0.0
    %107 = vmatprep.subr.mxu0 0.0
    %108 = vmatpush2.xpose.msra.mxu0 0.0
    %109 = vmatprep.subr.mxu0 0.0
    %110 = vmatpush2.xpose.msra.mxu0 0.0
    %111 = vmatprep.mubr.f32.mxu0 %v43
    %112 = vmatmul.mubr.f32.gmra.mxu0 %v42
    %v113 = vpop.f32.mrf.mxu0
    %v114 = vadd.f32 0.0, %v113
    %v115 = vpop.f32.mrf.mxu0
    %116 = vdwg.mxu0
    %v117 = vadd.f32 %v46, %v114
    %vm118 = vcmask 64512
    %119 = vst.msk [vmem:[#allocation2] sm:$0xff] %vm118, %v117
    // Predicated region
    $region22: #{tpu_custom_call.1} parent=1 // pred_check
      %p120 = pneg %p36
    $region23: #{tpu_custom_call.1} parent=1 // pred_check_branch
      %122 = sbr.rel (%p120) target = $region25
    $region24: #{tpu_custom_call.1} parent=1 // pred_region
      %v123 = vld [vmem:[#allocation2] sm:$0xff]
      %124 = vst.msk [vmem:[#allocation8] sm:$0xff] %vm118, %v123
    $region25: #{tpu_custom_call.1} parent=1 // pred_fallthru
      _
    // Predicated region
    $region26: #{tpu_custom_call.1} parent=1 // pred_check
      _
    $region27: #{tpu_custom_call.1} parent=1 // pred_check_branch
      %126 = sbr.rel (0) target = $region29
    $region28: #{tpu_custom_call.1} parent=1 // pred_region
      %s128 = ssub.s32 128, 128
      %129 = vsyncadd [#allocation5], %s128
      %s131 = sshll.u32 [#allocation8], 4
      %s132 = int_to_ptr.vmem [resolvable:$true] %s131
      %134 = dma.vmem_to_hbm [thread:$0]  %s132, 128, %s2, [#allocation5]
    $region29: #{tpu_custom_call.1} parent=1 // pred_fallthru
      _
    // Predicated region
    $region30: #{tpu_custom_call.1} parent=1 // pred_check
      _
    $region31: #{tpu_custom_call.1} parent=1 // pred_check_branch
      %136 = sbr.rel (0) target = $region33
    $region32: #{tpu_custom_call.1} parent=1 // pred_region
      %137 = dma.done [#allocation5], 128
    $region33: #{tpu_custom_call.1} parent=1 // pred_fallthru
      _
    %138 = vsyncpa [#allocation4], 1
    %139 = vsyncpa [#allocation7], 1
    %140 = vsyncpa [#allocation5], 1

</llo_original>
